<compile_context>
chip_gen: v6e
topology: v6e:2x2x1
jax: 0.10.0
libtpu: 0.0.40
codegen_flags: <defaults>
</compile_context>

<pallas_src>
import functools

import jax
import jax.numpy as jnp
import numpy as np
from jax.experimental import pallas as pl
from jax.experimental.pallas import tpu as pltpu

BN_EPS = 1e-5

_LANE_PACK_THRESHOLD = 128            # pack B_tile*L_out onto lanes only when L_out is narrow
_LANE_TARGET = 256                    # aim for >=256 output lanes per MXU matmul (v6e/v7x)
_VMEM_BLOCK_BUDGET = 40 * 1024 * 1024  # double-buffered blocks + scratch budget (v7x: 64 MiB phys)
_VMEM_LIMIT_BYTES = 48 * 1024 * 1024   # explicit scoped-VMEM limit handed to Mosaic


def _conv_relu_block(x_ref, w_ref, pad_ref, *, K, pad, L, L_out, B_tile, use_relu,
                     compute_dtype, pack_lanes):
    """Conv1d(+ReLU) for one (B_tile, C_in, L) block.

    Returns a (C_out, B_tile*L_out) f32 array when pack_lanes, else a list of B_tile
    (C_out, L_out) f32 arrays."""
    x = x_ref[...]                                     # (B_tile, C_in, L) f32
    b_tile, c_in, _ = x.shape

    if pad > 0:
        # Halo padding through a persistent VMEM scratch.  Re-zero the halo EVERY step
        # (do not gate on program_id: under "parallel" sharding each core has its own scratch).
        zhalo = jnp.zeros((b_tile, c_in, pad), jnp.float32)
        pad_ref[:, :, 0:pad] = zhalo
        pad_ref[:, :, pad + L:pad + L + pad] = zhalo
        pad_ref[:, :, pad:pad + L] = x
        xp = pad_ref[...]                              # (B_tile, C_in, L + 2*pad)
    else:
        xp = x

    w = w_ref[...]                                     # (C_out, K*C_in), already compute_dtype

    if pack_lanes:
        # Whole-block im2col: RHS = (K*C_in, B_tile*L_out) -> one fat MXU matmul.
        taps = []
        for k in range(K):
            cols = [xp[b, :, k:k + L_out] for b in range(B_tile)]          # (C_in, L_out) each
            taps.append(cols[0] if B_tile == 1 else jnp.concatenate(cols, axis=-1))
        xim = taps[0] if K == 1 else jnp.concatenate(taps, axis=0)         # (K*C_in, B*L_out)
        y = jnp.dot(w, xim.astype(compute_dtype), preferred_element_type=jnp.float32)
        if use_relu:
            y = jnp.maximum(y, 0.0)
        return y

    # L_out already fills >=128 lanes: each per-element matmul is lane-dense, so skip the
    # lane-concat relayout and just amortize DMA / per-step overhead over the B_tile loop.
    ys = []
    for b in range(B_tile):
        taps = [xp[b, :, k:k + L_out] for k in range(K)]
        xim = taps[0] if K == 1 else jnp.concatenate(taps, axis=0)         # (K*C_in, L_out)
        yb = jnp.dot(w, xim.astype(compute_dtype), preferred_element_type=jnp.float32)
        if use_relu:
            yb = jnp.maximum(yb, 0.0)
        ys.append(yb)
    return ys


def _stats_kernel(x_ref, w_ref, stats_ref, pad_ref, *, K, pad, L, L_out, B_tile, use_relu,
                  compute_dtype, pack_lanes):
    # Pass 1: per-block partial [sum, sum_sq] of the post-ReLU conv -- no activation writeback.
    y = _conv_relu_block(x_ref, w_ref, pad_ref, K=K, pad=pad, L=L, L_out=L_out, B_tile=B_tile,
                         use_relu=use_relu, compute_dtype=compute_dtype, pack_lanes=pack_lanes)
    if pack_lanes:
        s = jnp.sum(y, axis=-1, keepdims=True)                      # (C_out, 1)
        ss = jnp.sum(y * y, axis=-1, keepdims=True)
    else:
        s = sum(jnp.sum(yb, axis=-1, keepdims=True) for yb in y)
        ss = sum(jnp.sum(yb * yb, axis=-1, keepdims=True) for yb in y)
    # Note: single-pass E[x^2]-mean^2 in f32; fine at these scales, watch cancellation if the
    # activations ever carry a huge common offset (Welford would fix it at extra cost).
    stats_ref[0] = jnp.concatenate([s, ss], axis=-1)                # (C_out, 2)


def _output_kernel(x_ref, w_ref, scale_ref, shift_ref, o_ref, pad_ref, *, K, pad, L, L_out,
                   B_tile, use_relu, compute_dtype, pack_lanes):
    # Pass 2: recompute conv(+ReLU) (cheap; MXU is nearly idle), apply folded BN scale/shift,
    # write the final output once.
    y = _conv_relu_block(x_ref, w_ref, pad_ref, K=K, pad=pad, L=L, L_out=L_out, B_tile=B_tile,
                         use_relu=use_relu, compute_dtype=compute_dtype, pack_lanes=pack_lanes)
    sc = scale_ref[...]                                             # (C_out, 1) f32
    sh = shift_ref[...]
    if pack_lanes:
        yn = y * sc + sh                                            # (C_out, B_tile*L_out)
        for b in range(B_tile):
            o_ref[b] = yn[:, b * L_out:(b + 1) * L_out].astype(o_ref.dtype)
    else:
        for b in range(B_tile):
            o_ref[b] = (y[b] * sc + sh).astype(o_ref.dtype)


def _choose_b_tile(N, C_in, C_out, K, L, L_out):
    """Largest batch block that (a) targets >=_LANE_TARGET output lanes per MXU matmul,
    (b) keeps >=2 grid steps whenever N >= 2 (v7x has 2 TensorCores per chip), and
    (c) keeps the double-buffered block footprint inside the v7x-safe VMEM budget."""
    if N <= 1:
        return 1
    b = min(max(1, -(-_LANE_TARGET // L_out)),   # lane-packing target
            max(1, -(-N // 2)),                  # keep >= 2 grid steps for megacore sharding
            N)

    def footprint(bt):
        in_blk = bt * C_in * L * 4               # f32 input block
        out_blk = bt * C_out * L_out * 4         # f32 output block (pass 2)
        scratch = bt * C_in * (L + 2 * (K // 2)) * 4
        w_bytes = C_out * K * C_in * 4
        return 2 * (in_blk + out_blk) + scratch + w_bytes   # double-buffered in/out blocks

    while b > 1 and footprint(b) > _VMEM_BLOCK_BUDGET:
        b -= 1
    return b


@functools.partial(jax.jit, static_argnames=("kernel_size", "activation", "compute_dtype"))
def batchnorm_conv1d(x_ncl, weight_oik, gamma, beta, *, kernel_size, activation="relu",
                     compute_dtype=jnp.bfloat16):
    """x_ncl: (N, C_in, L) as in PyTorch. weight_oik: (C_out, C_in, K) (Conv1d, bias=False).
    Returns (N, C_out, L_out) with L_out = L + 2*(K//2) - K + 1 (== L for odd K), with
    training-mode BatchNorm1d applied (biased batch variance)."""
    if activation not in (None, "relu"):
        raise NotImplementedError("only activation in {None, 'relu'} is supported")

    N, C_in, L = x_ncl.shape
    C_out = weight_oik.shape[0]
    K = kernel_size
    pad = K // 2
    L_out = L + 2 * pad - K + 1

    b_tile = _choose_b_tile(N, C_in, C_out, K, L, L_out)
    num_blocks = -(-N // b_tile)
    n_pad = num_blocks * b_tile
    pack_lanes = (L_out < _LANE_PACK_THRESHOLD) and (b_tile > 1)

    x = x_ncl.astype(jnp.float32)
    if n_pad != N:
        # Zero batch padding contributes exactly 0 to the post-ReLU sums -> stats stay exact.
        x = jnp.pad(x, ((0, n_pad - N), (0, 0), (0, 0)))

    # (C_out, C_in, K) -> (C_out, K, C_in) -> (C_out, K*C_in): tap-major rows matching the
    # in-kernel im2col row order r = k*C_in + c.  Cast once to the MXU input dtype.
    w2 = jnp.transpose(weight_oik.astype(jnp.float32), (0, 2, 1)).reshape(C_out, K * C_in)
    w2 = w2.astype(compute_dtype)

    kcfg = dict(K=K, pad=pad, L=L, L_out=L_out, B_tile=b_tile,
                use_relu=(activation == "relu"), compute_dtype=compute_dtype,
                pack_lanes=pack_lanes)
    cparams = pltpu.CompilerParams(dimension_semantics=("parallel",),
                                   vmem_limit_bytes=_VMEM_LIMIT_BYTES)
    scratch = [pltpu.VMEM((b_tile, C_in, L + 2 * pad), jnp.float32)]

    # ---- Pass 1: conv + activation -> per-block partial stats only ----
    stats = pl.pallas_call(
        functools.partial(_stats_kernel, **kcfg),
        grid=(num_blocks,),
        out_shape=jax.ShapeDtypeStruct((num_blocks, C_out, 2), jnp.float32),
        in_specs=[pl.BlockSpec((b_tile, C_in, L), lambda n: (n, 0, 0)),
                  pl.BlockSpec((C_out, K * C_in), lambda n: (0, 0))],
        out_specs=pl.BlockSpec((1, C_out, 2), lambda n: (n, 0, 0)),
        scratch_shapes=scratch,
        compiler_params=cparams,
    )(x, w2)

    # ---- Tiny XLA glue: reduce stats and fold BN into a per-channel scale/shift ----
    count = float(N * L_out)                        # true N (padded batch rows contribute 0)
    total = jnp.sum(stats, axis=0)                  # (C_out, 2)
    mean = total[:, 0] / count
    var = jnp.maximum(total[:, 1] / count - mean * mean, 0.0)   # biased variance (PyTorch norm)
    scale = gamma.astype(jnp.float32) * jax.lax.rsqrt(var + BN_EPS)
    shift = beta.astype(jnp.float32) - mean * scale

    # ---- Pass 2: recompute conv(+ReLU), apply scale/shift, single output write ----
    out = pl.pallas_call(
        functools.partial(_output_kernel, **kcfg),
        grid=(num_blocks,),
        out_shape=jax.ShapeDtypeStruct((n_pad, C_out, L_out), jnp.float32),
        in_specs=[pl.BlockSpec((b_tile, C_in, L), lambda n: (n, 0, 0)),
                  pl.BlockSpec((C_out, K * C_in), lambda n: (0, 0)),
                  pl.BlockSpec((C_out, 1), lambda n: (0, 0)),
                  pl.BlockSpec((C_out, 1), lambda n: (0, 0))],
        out_specs=pl.BlockSpec((b_tile, C_out, L_out), lambda n: (n, 0, 0)),
        scratch_shapes=scratch,
        compiler_params=cparams,
    )(x, w2, scale.reshape(C_out, 1), shift.reshape(C_out, 1))
    return out[:N] if n_pad != N else out


def reference(x_ncl, weight_oik, gamma, beta, kernel_size, activation="relu"):
    """Plain-JAX reference mirroring the PyTorch forward (training-mode BN) in f32/HIGHEST."""
    pad = kernel_size // 2
    y = jax.lax.conv_general_dilated(
        x_ncl.astype(jnp.float32), weight_oik.astype(jnp.float32),
        window_strides=(1,), padding=[(pad, pad)],
        dimension_numbers=("NCH", "OIH", "NCH"),
        precision=jax.lax.Precision.HIGHEST)
    if activation == "relu":
        y = jnp.maximum(y, 0.0)
    mean = jnp.mean(y, axis=(0, 2), keepdims=True)
    var = jnp.mean((y - mean) ** 2, axis=(0, 2), keepdims=True)
    return (y - mean) * jax.lax.rsqrt(var + BN_EPS) \
        * gamma.reshape(1, -1, 1) + beta.reshape(1, -1, 1)


if __name__ == "__main__":
    def _run_case(N, C_IN, C_OUT, L, K, compute_dtype, rtol, atol, seed):
        key = jax.random.PRNGKey(seed)
        kx, kw, kg, kb = jax.random.split(key, 4)
        x = jax.random.normal(kx, (N, C_IN, L), dtype=jnp.float32)
        bound = 1.0 / np.sqrt(C_IN * K)
        w = jax.random.uniform(kw, (C_OUT, C_IN, K), minval=-bound, maxval=bound,
                               dtype=jnp.float32)
        gamma = 0.5 + jax.random.uniform(kg, (C_OUT,), dtype=jnp.float32)
        beta = 0.1 * jax.random.normal(kb, (C_OUT,), dtype=jnp.float32)

        out = batchnorm_conv1d(x, w, gamma, beta, kernel_size=K, activation="relu",
                               compute_dtype=compute_dtype)
        out = jax.block_until_ready(out)
        ref = reference(x, w, gamma, beta, K, activation="relu")
        assert out.shape == ref.shape
        np.testing.assert_allclose(np.asarray(out), np.asarray(ref), rtol=rtol, atol=atol)

    # Tight correctness check: f32 MXU path, module-style shapes (batch=2, C 4->8, L=16, K=3).
    _run_case(2, 4, 8, 16, 3, jnp.float32, 1e-4, 1e-4, seed=0)
    # Performance path: bf16 MXU inputs + B_tile=4 batch blocking (lane-packed fat matmul,
    # 2 grid steps).  Looser tolerance reflects bf16 input rounding only (stats stay f32).
    _run_case(8, 4, 8, 16, 3, jnp.bfloat16, 5e-2, 5e-2, seed=1)

    print("KERNEL_OK")
</pallas_src>

<mosaic_0001>
module attributes {stable_mosaic.version = 11 : i64} {
  func.func @_stats_kernel(%arg0: i32, %arg1: memref<1x4x16xf32, #tpu.memory_space<vmem>>, %arg2: memref<8x12xf32, #tpu.memory_space<vmem>>, %arg3: memref<1x8x2xf32, #tpu.memory_space<vmem>>, %arg4: memref<1x4x18xf32, #tpu.memory_space<vmem>>) attributes {dimension_semantics = [#tpu.dimension_semantics<parallel>], iteration_bounds = array<i64: 2>, scalar_prefetch = 0 : i64, scratch_operands = 1 : i64, tpu.core_type = #tpu.core_type<tc>, window_params = [{transform_indices = @transform_0, window_bounds = array<i64: 1, 4, 16>}, {pipeline_mode = #tpu.pipeline_mode<synchronous>, transform_indices = @transform_1, window_bounds = array<i64: 8, 12>}, {transform_indices = @transform_2, window_bounds = array<i64: 1, 8, 2>}]} {
    %c0 = arith.constant 0 : index
    %c0_0 = arith.constant 0 : index
    %c0_1 = arith.constant 0 : index
    %0 = vector.load %arg1[%c0, %c0_0, %c0_1] : memref<1x4x16xf32, #tpu.memory_space<vmem>>, vector<1x4x16xf32>
    %cst = arith.constant 0.000000e+00 : f32
    %1 = vector.broadcast %cst : f32 to vector<1x4x1xf32>
    %c0_2 = arith.constant 0 : index
    %c0_3 = arith.constant 0 : index
    %c0_4 = arith.constant 0 : index
    %2 = vector.load %arg4[%c0_2, %c0_3, %c0_4] : memref<1x4x18xf32, #tpu.memory_space<vmem>>, vector<1x4x1xf32>
    tpu.vector_store %arg4[%c0_2, %c0_3, %c0_4], %1 {strides = array<i32>} : memref<1x4x18xf32, #tpu.memory_space<vmem>>, vector<1x4x1xf32>,
    %c0_5 = arith.constant 0 : index
    %c0_6 = arith.constant 0 : index
    %c17 = arith.constant 17 : index
    %3 = vector.load %arg4[%c0_5, %c0_6, %c17] : memref<1x4x18xf32, #tpu.memory_space<vmem>>, vector<1x4x1xf32>
    tpu.vector_store %arg4[%c0_5, %c0_6, %c17], %1 {strides = array<i32>} : memref<1x4x18xf32, #tpu.memory_space<vmem>>, vector<1x4x1xf32>,
    %c0_7 = arith.constant 0 : index
    %c0_8 = arith.constant 0 : index
    %c1 = arith.constant 1 : index
    %4 = vector.load %arg4[%c0_7, %c0_8, %c1] : memref<1x4x18xf32, #tpu.memory_space<vmem>>, vector<1x4x16xf32>
    tpu.vector_store %arg4[%c0_7, %c0_8, %c1], %0 {strides = array<i32>} : memref<1x4x18xf32, #tpu.memory_space<vmem>>, vector<1x4x16xf32>,
    %c0_9 = arith.constant 0 : index
    %c0_10 = arith.constant 0 : index
    %c0_11 = arith.constant 0 : index
    %5 = vector.load %arg4[%c0_9, %c0_10, %c0_11] : memref<1x4x18xf32, #tpu.memory_space<vmem>>, vector<1x4x18xf32>
    %c0_12 = arith.constant 0 : index
    %c0_13 = arith.constant 0 : index
    %6 = vector.load %arg2[%c0_12, %c0_13] : memref<8x12xf32, #tpu.memory_space<vmem>>, vector<8x12xf32>
    %7 = vector.extract_strided_slice %5 {offsets = [0, 0, 0], sizes = [1, 4, 16], strides = [1, 1, 1]} : vector<1x4x18xf32> to vector<1x4x16xf32>
    %8 = vector.shape_cast %7 : vector<1x4x16xf32> to vector<4x16xf32>
    %9 = vector.extract_strided_slice %5 {offsets = [0, 0, 1], sizes = [1, 4, 16], strides = [1, 1, 1]} : vector<1x4x18xf32> to vector<1x4x16xf32>
    %10 = vector.shape_cast %9 : vector<1x4x16xf32> to vector<4x16xf32>
    %11 = vector.extract_strided_slice %5 {offsets = [0, 0, 2], sizes = [1, 4, 16], strides = [1, 1, 1]} : vector<1x4x18xf32> to vector<1x4x16xf32>
    %12 = vector.shape_cast %11 : vector<1x4x16xf32> to vector<4x16xf32>
    %13 = tpu.concatenate %8, %10, %12 in 0 : vector<4x16xf32>, vector<4x16xf32>, vector<4x16xf32> -> vector<12x16xf32>
    %cst_14 = arith.constant dense<0.000000e+00> : vector<8x16xf32>
    %14 = tpu.matmul %6, %13, %cst_14 {dimension_numbers = #tpu.dot_dimension_numbers<[1], [0], [0], [1], [0, 0, 1, 1], [], []>} : vector<8x12xf32>, vector<12x16xf32>, vector<8x16xf32> -> vector<8x16xf32>
    %cst_15 = arith.constant 0.000000e+00 : f32
    %15 = vector.broadcast %cst_15 : f32 to vector<8x16xf32>
    %16 = arith.maximumf %14, %15 : vector<8x16xf32>
    %cst_16 = arith.constant dense<0.000000e+00> : vector<8xf32>
    %17 = vector.multi_reduction <add>, %16, %cst_16 [1] : vector<8x16xf32> to vector<8xf32>
    %18 = vector.shape_cast %17 : vector<8xf32> to vector<8x1xf32>
    %cst_17 = arith.constant 0.000000e+00 : f32
    %19 = vector.broadcast %cst_17 : f32 to vector<8x1xf32>
    %20 = arith.addf %19, %18 : vector<8x1xf32>
    %21 = arith.mulf %16, %16 : vector<8x16xf32>
    %cst_18 = arith.constant dense<0.000000e+00> : vector<8xf32>
    %22 = vector.multi_reduction <add>, %21, %cst_18 [1] : vector<8x16xf32> to vector<8xf32>
    %23 = vector.shape_cast %22 : vector<8xf32> to vector<8x1xf32>
    %cst_19 = arith.constant 0.000000e+00 : f32
    %24 = vector.broadcast %cst_19 : f32 to vector<8x1xf32>
    %25 = arith.addf %24, %23 : vector<8x1xf32>
    %26 = tpu.concatenate %20, %25 in 1 : vector<8x1xf32>, vector<8x1xf32> -> vector<8x2xf32>
    %c0_20 = arith.constant 0 : index
    %c0_21 = arith.constant 0 : index
    %c0_22 = arith.constant 0 : index
    %27 = vector.load %arg3[%c0_20, %c0_21, %c0_22] : memref<1x8x2xf32, #tpu.memory_space<vmem>>, vector<1x8x2xf32>
    %28 = vector.shape_cast %27 : vector<1x8x2xf32> to vector<8x2xf32>
    %29 = vector.shape_cast %26 : vector<8x2xf32> to vector<1x8x2xf32>
    tpu.vector_store %arg3[%c0_20, %c0_21, %c0_22], %29 {strides = array<i32>} : memref<1x8x2xf32, #tpu.memory_space<vmem>>, vector<1x8x2xf32>,
    return
  }
  func.func @transform_0(%arg0: i32) -> (i32, i32, i32) {
    %c0_i32 = arith.constant 0 : i32
    %c0_i32_0 = arith.constant 0 : i32
    %c0_i32_1 = arith.constant 0 : i32
    return %arg0, %c0_i32, %c0_i32_0 : i32, i32, i32
  }
  func.func @transform_1(%arg0: i32) -> (i32, i32) {
    %c0_i32 = arith.constant 0 : i32
    %c0_i32_0 = arith.constant 0 : i32
    %c0_i32_1 = arith.constant 0 : i32
    return %c0_i32, %c0_i32_0 : i32, i32
  }
  func.func @transform_2(%arg0: i32) -> (i32, i32, i32) {
    %c0_i32 = arith.constant 0 : i32
    %c0_i32_0 = arith.constant 0 : i32
    %c0_i32_1 = arith.constant 0 : i32
    return %arg0, %c0_i32, %c0_i32_0 : i32, i32, i32
  }
}

module attributes {stable_mosaic.version = 11 : i64} {
  func.func @_output_kernel(%arg0: i32, %arg1: memref<1x4x16xf32, #tpu.memory_space<vmem>>, %arg2: memref<8x12xf32, #tpu.memory_space<vmem>>, %arg3: memref<8x1xf32, #tpu.memory_space<vmem>>, %arg4: memref<8x1xf32, #tpu.memory_space<vmem>>, %arg5: memref<1x8x16xf32, #tpu.memory_space<vmem>>, %arg6: memref<1x4x18xf32, #tpu.memory_space<vmem>>) attributes {dimension_semantics = [#tpu.dimension_semantics<parallel>], iteration_bounds = array<i64: 2>, scalar_prefetch = 0 : i64, scratch_operands = 1 : i64, tpu.core_type = #tpu.core_type<tc>, window_params = [{transform_indices = @transform_0, window_bounds = array<i64: 1, 4, 16>}, {pipeline_mode = #tpu.pipeline_mode<synchronous>, transform_indices = @transform_1, window_bounds = array<i64: 8, 12>}, {pipeline_mode = #tpu.pipeline_mode<synchronous>, transform_indices = @transform_2, window_bounds = array<i64: 8, 1>}, {pipeline_mode = #tpu.pipeline_mode<synchronous>, transform_indices = @transform_3, window_bounds = array<i64: 8, 1>}, {transform_indices = @transform_4, window_bounds = array<i64: 1, 8, 16>}]} {
    %c0 = arith.constant 0 : index
    %c0_0 = arith.constant 0 : index
    %c0_1 = arith.constant 0 : index
    %0 = vector.load %arg1[%c0, %c0_0, %c0_1] : memref<1x4x16xf32, #tpu.memory_space<vmem>>, vector<1x4x16xf32>
    %cst = arith.constant 0.000000e+00 : f32
    %1 = vector.broadcast %cst : f32 to vector<1x4x1xf32>
    %c0_2 = arith.constant 0 : index
    %c0_3 = arith.constant 0 : index
    %c0_4 = arith.constant 0 : index
    %2 = vector.load %arg6[%c0_2, %c0_3, %c0_4] : memref<1x4x18xf32, #tpu.memory_space<vmem>>, vector<1x4x1xf32>
    tpu.vector_store %arg6[%c0_2, %c0_3, %c0_4], %1 {strides = array<i32>} : memref<1x4x18xf32, #tpu.memory_space<vmem>>, vector<1x4x1xf32>,
    %c0_5 = arith.constant 0 : index
    %c0_6 = arith.constant 0 : index
    %c17 = arith.constant 17 : index
    %3 = vector.load %arg6[%c0_5, %c0_6, %c17] : memref<1x4x18xf32, #tpu.memory_space<vmem>>, vector<1x4x1xf32>
    tpu.vector_store %arg6[%c0_5, %c0_6, %c17], %1 {strides = array<i32>} : memref<1x4x18xf32, #tpu.memory_space<vmem>>, vector<1x4x1xf32>,
    %c0_7 = arith.constant 0 : index
    %c0_8 = arith.constant 0 : index
    %c1 = arith.constant 1 : index
    %4 = vector.load %arg6[%c0_7, %c0_8, %c1] : memref<1x4x18xf32, #tpu.memory_space<vmem>>, vector<1x4x16xf32>
    tpu.vector_store %arg6[%c0_7, %c0_8, %c1], %0 {strides = array<i32>} : memref<1x4x18xf32, #tpu.memory_space<vmem>>, vector<1x4x16xf32>,
    %c0_9 = arith.constant 0 : index
    %c0_10 = arith.constant 0 : index
    %c0_11 = arith.constant 0 : index
    %5 = vector.load %arg6[%c0_9, %c0_10, %c0_11] : memref<1x4x18xf32, #tpu.memory_space<vmem>>, vector<1x4x18xf32>
    %c0_12 = arith.constant 0 : index
    %c0_13 = arith.constant 0 : index
    %6 = vector.load %arg2[%c0_12, %c0_13] : memref<8x12xf32, #tpu.memory_space<vmem>>, vector<8x12xf32>
    %7 = vector.extract_strided_slice %5 {offsets = [0, 0, 0], sizes = [1, 4, 16], strides = [1, 1, 1]} : vector<1x4x18xf32> to vector<1x4x16xf32>
    %8 = vector.shape_cast %7 : vector<1x4x16xf32> to vector<4x16xf32>
    %9 = vector.extract_strided_slice %5 {offsets = [0, 0, 1], sizes = [1, 4, 16], strides = [1, 1, 1]} : vector<1x4x18xf32> to vector<1x4x16xf32>
    %10 = vector.shape_cast %9 : vector<1x4x16xf32> to vector<4x16xf32>
    %11 = vector.extract_strided_slice %5 {offsets = [0, 0, 2], sizes = [1, 4, 16], strides = [1, 1, 1]} : vector<1x4x18xf32> to vector<1x4x16xf32>
    %12 = vector.shape_cast %11 : vector<1x4x16xf32> to vector<4x16xf32>
    %13 = tpu.concatenate %8, %10, %12 in 0 : vector<4x16xf32>, vector<4x16xf32>, vector<4x16xf32> -> vector<12x16xf32>
    %cst_14 = arith.constant dense<0.000000e+00> : vector<8x16xf32>
    %14 = tpu.matmul %6, %13, %cst_14 {dimension_numbers = #tpu.dot_dimension_numbers<[1], [0], [0], [1], [0, 0, 1, 1], [], []>} : vector<8x12xf32>, vector<12x16xf32>, vector<8x16xf32> -> vector<8x16xf32>
    %cst_15 = arith.constant 0.000000e+00 : f32
    %15 = vector.broadcast %cst_15 : f32 to vector<8x16xf32>
    %16 = arith.maximumf %14, %15 : vector<8x16xf32>
    %c0_16 = arith.constant 0 : index
    %c0_17 = arith.constant 0 : index
    %17 = vector.load %arg3[%c0_16, %c0_17] : memref<8x1xf32, #tpu.memory_space<vmem>>, vector<8x1xf32>
    %c0_18 = arith.constant 0 : index
    %c0_19 = arith.constant 0 : index
    %18 = vector.load %arg4[%c0_18, %c0_19] : memref<8x1xf32, #tpu.memory_space<vmem>>, vector<8x1xf32>
    %19 = vector.broadcast %17 : vector<8x1xf32> to vector<8x16xf32>
    %20 = arith.mulf %16, %19 : vector<8x16xf32>
    %21 = vector.broadcast %18 : vector<8x1xf32> to vector<8x16xf32>
    %22 = arith.addf %20, %21 : vector<8x16xf32>
    %c0_20 = arith.constant 0 : index
    %c0_21 = arith.constant 0 : index
    %c0_22 = arith.constant 0 : index
    %23 = vector.load %arg5[%c0_20, %c0_21, %c0_22] : memref<1x8x16xf32, #tpu.memory_space<vmem>>, vector<1x8x16xf32>
    %24 = vector.shape_cast %23 : vector<1x8x16xf32> to vector<8x16xf32>
    %25 = vector.shape_cast %22 : vector<8x16xf32> to vector<1x8x16xf32>
    tpu.vector_store %arg5[%c0_20, %c0_21, %c0_22], %25 {strides = array<i32>} : memref<1x8x16xf32, #tpu.memory_space<vmem>>, vector<1x8x16xf32>,
    return
  }
  func.func @transform_0(%arg0: i32) -> (i32, i32, i32) {
    %c0_i32 = arith.constant 0 : i32
    %c0_i32_0 = arith.constant 0 : i32
    %c0_i32_1 = arith.constant 0 : i32
    return %arg0, %c0_i32, %c0_i32_0 : i32, i32, i32
  }
  func.func @transform_1(%arg0: i32) -> (i32, i32) {
    %c0_i32 = arith.constant 0 : i32
    %c0_i32_0 = arith.constant 0 : i32
    %c0_i32_1 = arith.constant 0 : i32
    return %c0_i32, %c0_i32_0 : i32, i32
  }
  func.func @transform_2(%arg0: i32) -> (i32, i32) {
    %c0_i32 = arith.constant 0 : i32
    %c0_i32_0 = arith.constant 0 : i32
    %c0_i32_1 = arith.constant 0 : i32
    return %c0_i32, %c0_i32_0 : i32, i32
  }
  func.func @transform_3(%arg0: i32) -> (i32, i32) {
    %c0_i32 = arith.constant 0 : i32
    %c0_i32_0 = arith.constant 0 : i32
    %c0_i32_1 = arith.constant 0 : i32
    return %c0_i32, %c0_i32_0 : i32, i32
  }
  func.func @transform_4(%arg0: i32) -> (i32, i32, i32) {
    %c0_i32 = arith.constant 0 : i32
    %c0_i32_0 = arith.constant 0 : i32
    %c0_i32_1 = arith.constant 0 : i32
    return %arg0, %c0_i32, %c0_i32_0 : i32, i32, i32
  }
}

</mosaic_0001>

<llo_original>
// kernel: batchnorm_conv1d.2
$region0: #{batchnorm_conv1d.2}
  #allocation0 [shape = 'u32[]', space=smem, size = 0x4, offset = 0x4, fixed_abs, tag = 'smem constant byte address 0x4 - core index']
  #allocation1 [shape = 'u32[144,128]{1,0:T(1,128)}', space=vmem, size = 0x12000, scoped, tag = 'internal scratch']
  #allocation2 [shape = 'f32[1,4,18]{2,1,0:T(4,128)}', space=vmem, size = 0x800, scoped, tag = 'scratch operand']
  %s0 = inlined_call_operand.vmem [shape: f32[2,4,16], index: 0, kind: input, shape index: {}]
  %s1 = inlined_call_operand.vmem [shape: f32[8,12], index: 1, kind: input, shape index: {}]
  %s2 = inlined_call_operand.vmem [shape: f32[2,8,2], index: 2, kind: output, shape index: {}]
  %s3 = sld [smem:[#allocation0]]
  $region41: #{batchnorm_conv1d.2} parent=0
    _
  %s5 = ssub.s32 1, %s3
  %s6 = scalar_select 0, %s5, %s3
  loop: start=0, step=1, limit=4
  $region2: #{batchnorm_conv1d.2} parent=0 // loop_pre_header
    _
  $region3: #{batchnorm_conv1d.2} parent=0 // loop_header
    %s8 = sphi 0, %s12
    %p9 = scmp.ge.s32.totalorder %s8, 4
    %s18 = sphi 0, %s20
    %s21 = sphi 0, %s18
    %s22 = sphi 0, %s21
    %s38 = sphi 0, %s22
    %s42 = sphi 0, %s42
    %s44 = sphi 0, %s42
    %s45 = sphi 0, %s44
    %s59 = sphi 0, %s45
    %s65 = sphi 0, %s67
    %s68 = sphi 0, %s65
    %s69 = sphi 0, %s68
    %s85 = sphi 0, %s69
  $region4: #{batchnorm_conv1d.2} parent=0 // loop_header_branch
    %11 = sbr.rel (%p9) target = $region8
  $region5: #{batchnorm_conv1d.2} parent=0 // loop_body
    %s13 = ssub.s32 %s8, 1
    %s14 = ssub.s32 %s8, 2
    %s15 = sadd.s32 %s8, 1
    %s16 = ssub.s32 %s8, %s15
    %p17 = scmp.eq.s32.totalorder %s16, 0
    %s19 = sadd.s32 %s18, 1
    %s20 = scalar_select %p17, %s18, %s19
    %p23 = pneg %p17
    %p24 = scmp.eq.s32.totalorder %s8, 1
    %p25 = por %p23, %p24
    %p26 = scmp.ne.s32.totalorder %s18, %s21
    %p27 = scmp.eq.s32.totalorder %s8, 0
    %p28 = por %p26, %p27
    %p29 = scmp.ne.s32.totalorder %s18, %s21
    %p30 = scmp.eq.s32.totalorder %s13, 1
    %p31 = por %p29, %p30
    %p32 = scmp.ne.s32.totalorder %s21, %s22
    %p33 = scmp.eq.s32.totalorder %s13, 0
    %p34 = por %p32, %p33
    %p35 = scmp.ne.s32.totalorder %s21, %s22
    %p36 = scmp.eq.s32.totalorder %s14, 1
    %p37 = por %p35, %p36
    %p39 = scmp.ne.s32.totalorder %s22, %s38
    %p40 = scmp.eq.s32.totalorder %s14, 0
    %p41 = por %p39, %p40
    %s43 = sadd.s32 %s42, 1
    %p46 = scmp.eq.s32.totalorder %s8, 1
    %p47 = scmp.ne.s32.totalorder %s42, %s44
    %p48 = scmp.eq.s32.totalorder %s8, 0
    %p49 = por %p47, %p48
    %p50 = scmp.ne.s32.totalorder %s42, %s44
    %p51 = scmp.eq.s32.totalorder %s13, 1
    %p52 = por %p50, %p51
    %p53 = scmp.ne.s32.totalorder %s44, %s45
    %p54 = scmp.eq.s32.totalorder %s13, 0
    %p55 = por %p53, %p54
    %p56 = scmp.ne.s32.totalorder %s44, %s45
    %p57 = scmp.eq.s32.totalorder %s14, 1
    %p58 = por %p56, %p57
    %p60 = scmp.ne.s32.totalorder %s45, %s59
    %p61 = scmp.eq.s32.totalorder %s14, 0
    %p62 = por %p60, %p61
    %s63 = ssub.s32 %s8, %s15
    %p64 = scmp.eq.s32.totalorder %s63, 0
    %s66 = sadd.s32 %s65, 1
    %s67 = scalar_select %p64, %s65, %s66
    %p70 = pneg %p64
    %p71 = scmp.eq.s32.totalorder %s8, 1
    %p72 = por %p70, %p71
    %p73 = scmp.ne.s32.totalorder %s65, %s68
    %p74 = scmp.eq.s32.totalorder %s8, 0
    %p75 = por %p73, %p74
    %p76 = scmp.ne.s32.totalorder %s65, %s68
    %p77 = scmp.eq.s32.totalorder %s13, 1
    %p78 = por %p76, %p77
    %p79 = scmp.ne.s32.totalorder %s68, %s69
    %p80 = scmp.eq.s32.totalorder %s13, 0
    %p81 = por %p79, %p80
    %p82 = scmp.ne.s32.totalorder %s68, %s69
    %p83 = scmp.eq.s32.totalorder %s14, 1
    %p84 = por %p82, %p83
    %p86 = scmp.ne.s32.totalorder %s69, %s85
    %p87 = scmp.eq.s32.totalorder %s14, 0
    %p88 = por %p86, %p87
    %p89 = scmp.le.s32.totalorder 1, %s8
    %p90 = scmp.lt.s32.totalorder %s8, 3
    %p91 = pnand %p89, %p90
    %p92 = pneg %p91
    // Predicated region
    $region9: #{batchnorm_conv1d.2} parent=5 // pred_check
      _
    $region10: #{batchnorm_conv1d.2} parent=5 // pred_check_branch
      %94 = sbr.rel (%p91) target = $region12
    $region11: #{batchnorm_conv1d.2} parent=5 // pred_region
      %s95 = ssub.s32 %s8, 1
      // Predicated region
      $region13: #{batchnorm_conv1d.2} parent=11 // pred_check
        %p96 = pneg %p55
      $region14: #{batchnorm_conv1d.2} parent=11 // pred_check_branch
        %98 = sbr.rel (%p96) target = $region16
      $region15: #{batchnorm_conv1d.2} parent=11 // pred_region
        _
      $region16: #{batchnorm_conv1d.2} parent=11 // pred_fallthru
        _
    $region12: #{batchnorm_conv1d.2} parent=5 // pred_fallthru
      _
    %p99 = scmp.lt.s32.totalorder %s8, 2
    // Predicated region
    $region17: #{batchnorm_conv1d.2} parent=5 // pred_check
      %p100 = pneg %p99
    $region18: #{batchnorm_conv1d.2} parent=5 // pred_check_branch
      %102 = sbr.rel (%p100) target = $region20
    $region19: #{batchnorm_conv1d.2} parent=5 // pred_region
      // Predicated region
      $region21: #{batchnorm_conv1d.2} parent=19 // pred_check
        %p103 = pneg %p28
      $region22: #{batchnorm_conv1d.2} parent=19 // pred_check_branch
        %105 = sbr.rel (%p103) target = $region24
      $region23: #{batchnorm_conv1d.2} parent=19 // pred_region
        %p106 = scmp.lt.s32.totalorder %s8, 1
        %s107 = scalar_select %p106, %s8, 1
        %s108 = smul.addr %s107, 4
        %s109 = scalar_lea.vmem %s0, %s108
      $region24: #{batchnorm_conv1d.2} parent=19 // pred_fallthru
        _
    $region20: #{batchnorm_conv1d.2} parent=5 // pred_fallthru
      _
    %p110 = scmp.le.s32.totalorder 1, %s8
    %p111 = scmp.lt.s32.totalorder %s8, 3
    %p112 = pnand %p110, %p111
    %p113 = pneg %p112
    // Predicated region
    $region25: #{batchnorm_conv1d.2} parent=5 // pred_check
      _
    $region26: #{batchnorm_conv1d.2} parent=5 // pred_check_branch
      %115 = sbr.rel (%p112) target = $region28
    $region27: #{batchnorm_conv1d.2} parent=5 // pred_region
      %s116 = ssub.s32 %s8, 1
      %p117 = scmp.lt.s32.totalorder %s13, 1
      %s118 = scalar_select %p117, %s13, 1
      %s119 = smul.addr %s118, 4
      %s120 = scalar_lea.vmem %s0, %s119
      %p121 = pneg %p34
      %p122 = pneg %p31
      %p123 = pneg %p55
      %p124 = pneg %p52
      %p125 = pneg %p81
      %p126 = pneg %p78
      %p127 = scmp.lt.s32.totalorder %s13, 1
      %s128 = scalar_select %p127, %s13, 1
      %s129 = smul.addr %s128, 8
      %s130 = scalar_lea.vmem %s2, %s129
      %p131 = scmp.lt.s32.totalorder %s13, 1
      %s132 = scalar_select %p131, %s13, 1
      %s133 = smul.addr %s132, 4
      %s134 = scalar_lea.vmem %s0, %s133
      %p135 = scmp.lt.s32.totalorder %s13, 1
      %s136 = scalar_select %p135, %s13, 1
      %s137 = smul.addr %s136, 8
      %s138 = scalar_lea.vmem %s2, %s137
      %v139 = vld [vmem:[%s134] sm:$0xf]
      %vm140 = vcmask 3072
      %141 = vst.msk [vmem:[#allocation2] sm:$0xf] %vm140, 0.0
      %vm142 = vcmask 142472
      %143 = vst.msk [vmem:[#allocation2] sm:$0xf] %vm142, 0.0
      %145 = vrot.lane.b32.xlu0 %v139, 1
      %v146 = vpop.permute.xlu0 %145
      %vm148 = vcmask 134152
      %149 = vst.msk [vmem:[#allocation2] sm:$0xf] %vm148, %v146
      %v150 = vld [vmem:[#allocation2] sm:$0xf]
      %v151 = vld [vmem:[%s1] sm:$0xff]
      %v153 = vrot.slane %v150, 4
      %154 = vrot.lane.b32.xlu0 %v153, 127
      %v155 = vpop.permute.xlu0 %154
      %157 = vrot.lane.b32.xlu0 %v150, 126
      %v158 = vpop.permute.xlu0 %157
      %vm159 = vcmask 1043456
      %v160 = vsel %vm159, %v150, %v155
      %vm161 = vcmask 97280
      %v163 = vsel %vm161, %v151, 0
      %v165 = vsel %vm159, %v158, 0
      %167 = vmatprep.subr.mxu0 0.0
      %168 = vmatpush1.msra.mxu0 0.0
      %169 = vmatprep.subr.mxu0 0.0
      %170 = vmatpush1.msra.mxu0 0.0
      %171 = vmatprep.subr.mxu0 0.0
      %172 = vmatpush1.msra.mxu0 0.0
      %173 = vmatprep.subr.mxu0 0.0
      %174 = vmatpush1.msra.mxu0 0.0
      %175 = vmatprep.subr.mxu0 0.0
      %176 = vmatpush1.msra.mxu0 0.0
      %177 = vmatprep.subr.mxu0 0.0
      %178 = vmatpush1.msra.mxu0 0.0
      %179 = vmatprep.subr.mxu0 0.0
      %180 = vmatpush1.msra.mxu0 0.0
      %181 = vmatprep.subr.mxu0 0.0
      %182 = vmatpush1.msra.mxu0 0.0
      %183 = vmatprep.subr.mxu0 0.0
      %184 = vmatpush1.msra.mxu0 0.0
      %185 = vmatprep.subr.mxu0 0.0
      %186 = vmatpush1.msra.mxu0 0.0
      %187 = vmatprep.subr.mxu0 0.0
      %188 = vmatpush1.msra.mxu0 0.0
      %189 = vmatprep.subr.mxu0 0.0
      %190 = vmatpush1.msra.mxu0 0.0
      %191 = vmatprep.subr.mxu0 0.0
      %192 = vmatpush1.msra.mxu0 0.0
      %193 = vmatprep.subr.mxu0 0.0
      %194 = vmatpush1.msra.mxu0 0.0
      %195 = vmatprep.subr.mxu0 0.0
      %196 = vmatpush1.msra.mxu0 %v165
      %197 = vmatprep.subr.mxu0 0.0
      %198 = vmatpush1.msra.mxu0 %v160
      %199 = vmatprep.subr.mxu0 0.0
      %200 = vmatpush2.msra.mxu0 0.0
      %201 = vmatprep.subr.mxu0 0.0
      %202 = vmatpush2.msra.mxu0 0.0
      %203 = vmatprep.subr.mxu0 0.0
      %204 = vmatpush2.msra.mxu0 0.0
      %205 = vmatprep.subr.mxu0 0.0
      %206 = vmatpush2.msra.mxu0 0.0
      %207 = vmatprep.subr.mxu0 0.0
      %208 = vmatpush2.msra.mxu0 0.0
      %209 = vmatprep.subr.mxu0 0.0
      %210 = vmatpush2.msra.mxu0 0.0
      %211 = vmatprep.subr.mxu0 0.0
      %212 = vmatpush2.msra.mxu0 0.0
      %213 = vmatprep.subr.mxu0 0.0
      %214 = vmatpush2.msra.mxu0 0.0
      %215 = vmatprep.subr.mxu0 0.0
      %216 = vmatpush2.msra.mxu0 0.0
      %217 = vmatprep.subr.mxu0 0.0
      %218 = vmatpush2.msra.mxu0 0.0
      %219 = vmatprep.subr.mxu0 0.0
      %220 = vmatpush2.msra.mxu0 0.0
      %221 = vmatprep.subr.mxu0 0.0
      %222 = vmatpush2.msra.mxu0 0.0
      %223 = vmatprep.subr.mxu0 0.0
      %224 = vmatpush2.msra.mxu0 0.0
      %225 = vmatprep.subr.mxu0 0.0
      %226 = vmatpush2.msra.mxu0 0.0
      %227 = vmatprep.subr.mxu0 0.0
      %228 = vmatpush2.msra.mxu0 0.0
      %229 = vmatprep.subr.mxu0 0.0
      %230 = vmatpush2.msra.mxu0 0.0
      %231 = vmatprep.mubr.f32.mxu0 0.0
      %232 = vmatmul.mubr.f32.gmra.mxu0 %v163
      %v233 = vpop.f32.mrf.mxu0
      %v234 = vadd.f32 0.0, %v233
      %v235 = vpop.f32.mrf.mxu0
      %236 = vdwg.mxu0
      %v237 = vmax.f32 %v234, 0.0
      %vm238 = vcmask 130048
      %v239 = vsel %vm238, %v237, 0.0
      %240 = vadd.xlane.f32.xlu0 %v239
      %v241 = vpop.xlane.xlu0 %240
      %v242 = vadd.f32 %v241, 0.0
      %v243 = vmul.f32 %v237, %v237
      %v244 = vsel %vm238, %v243, 0.0
      %245 = vadd.xlane.f32.xlu0 %v244
      %v246 = vpop.xlane.xlu0 %245
      %v247 = vadd.f32 %v246, 0.0
      %vm248 = vcmask 7168
      %v249 = vsel %vm248, %v242, %v247
      %vm250 = vcmask 15360
      %251 = vst.msk [vmem:[%s138] sm:$0xff] %vm250, %v249
      %p252 = scmp.lt.s32.totalorder %s13, 1
      %s253 = scalar_select %p252, %s13, 1
      %s254 = smul.addr %s253, 8
      %s255 = scalar_lea.vmem %s2, %s254
      // Predicated region
      $region29: #{batchnorm_conv1d.2} parent=27 // pred_check
        %p256 = pneg %p78
      $region30: #{batchnorm_conv1d.2} parent=27 // pred_check_branch
        %258 = sbr.rel (%p256) target = $region32
      $region31: #{batchnorm_conv1d.2} parent=27 // pred_region
        _
      $region32: #{batchnorm_conv1d.2} parent=27 // pred_fallthru
        _
    $region28: #{batchnorm_conv1d.2} parent=5 // pred_fallthru
      _
    %p259 = scmp.le.s32.totalorder 2, %s8
    // Predicated region
    $region33: #{batchnorm_conv1d.2} parent=5 // pred_check
      %p260 = pneg %p259
    $region34: #{batchnorm_conv1d.2} parent=5 // pred_check_branch
      %262 = sbr.rel (%p260) target = $region36
    $region35: #{batchnorm_conv1d.2} parent=5 // pred_region
      %s263 = ssub.s32 %s8, 2
      // Predicated region
      $region37: #{batchnorm_conv1d.2} parent=35 // pred_check
        %p264 = pneg %p84
      $region38: #{batchnorm_conv1d.2} parent=35 // pred_check_branch
        %266 = sbr.rel (%p264) target = $region40
      $region39: #{batchnorm_conv1d.2} parent=35 // pred_region
        %p267 = scmp.lt.s32.totalorder %s14, 1
        %s268 = scalar_select %p267, %s14, 1
        %s269 = smul.addr %s268, 8
        %s270 = scalar_lea.vmem %s2, %s269
      $region40: #{batchnorm_conv1d.2} parent=35 // pred_fallthru
        _
    $region36: #{batchnorm_conv1d.2} parent=5 // pred_fallthru
      _
  $region6: #{batchnorm_conv1d.2} parent=0 // loop_footer
    %s12 = sadd.s32 1, %s8
  $region7: #{batchnorm_conv1d.2} parent=0 // loop_footer_branch
    %7 = sbr.rel target = $region3
  $region8: #{batchnorm_conv1d.2} parent=0 // loop_exit
    _

// kernel: batchnorm_conv1d.3
$region0: #{batchnorm_conv1d.3}
  #allocation0 [shape = 'u32[]', space=smem, size = 0x4, offset = 0x4, fixed_abs, tag = 'smem constant byte address 0x4 - core index']
  #allocation1 [shape = 'u32[144,128]{1,0:T(1,128)}', space=vmem, size = 0x12000, scoped, tag = 'internal scratch']
  #allocation2 [shape = 'f32[1,4,18]{2,1,0:T(4,128)}', space=vmem, size = 0x800, scoped, tag = 'scratch operand']
  %s0 = inlined_call_operand.vmem [shape: f32[2,4,16], index: 0, kind: input, shape index: {}]
  %s1 = inlined_call_operand.vmem [shape: f32[8,12], index: 1, kind: input, shape index: {}]
  %s2 = inlined_call_operand.vmem [shape: f32[8,1], index: 2, kind: input, shape index: {}]
  %s3 = inlined_call_operand.vmem [shape: f32[8,1], index: 3, kind: input, shape index: {}]
  %s4 = inlined_call_operand.hbm [shape: f32[2,8,16], index: 4, kind: output, shape index: {}]
  %s5 = sld [smem:[#allocation0]]
  $region49: #{batchnorm_conv1d.3} parent=0
    _
  %s7 = ssub.s32 1, %s5
  %s8 = scalar_select 0, %s7, %s5
  $region1: #{batchnorm_conv1d.3} parent=0
    #allocation3 [shape = 'u8[8192]{0}', space=vmem, size = 0x2000, scoped, tag = 'output window, operand 0']
    #allocation4 [shape = 's32[2]{0}', space=sflag, size = 0x8, scoped, tag = 'scoped memory for batchnorm_conv1d.3']
    %9 = vsyncpa [#allocation4], 0
    %s10 = scalar_lea.sflag [#allocation4], 1
    %11 = vsyncpa %s10, 0
    loop: start=0, step=1, limit=4
    $region2: #{batchnorm_conv1d.3} parent=1 // loop_pre_header
      _
    $region3: #{batchnorm_conv1d.3} parent=1 // loop_header
      %s13 = sphi 0, %s17
      %p14 = scmp.ge.s32.totalorder %s13, 4
      %s23 = sphi 0, %s25
      %s26 = sphi 0, %s23
      %s27 = sphi 0, %s26
      %s43 = sphi 0, %s27
      %s47 = sphi 0, %s47
      %s49 = sphi 0, %s47
      %s50 = sphi 0, %s49
      %s64 = sphi 0, %s50
      %s68 = sphi 0, %s68
      %s70 = sphi 0, %s68
      %s71 = sphi 0, %s70
      %s85 = sphi 0, %s71
      %s89 = sphi 0, %s89
      %s91 = sphi 0, %s89
      %s92 = sphi 0, %s91
      %s106 = sphi 0, %s92
      %s112 = sphi 0, %s114
      %s115 = sphi 0, %s112
      %s116 = sphi 0, %s115
      %s132 = sphi 0, %s116
    $region4: #{batchnorm_conv1d.3} parent=1 // loop_header_branch
      %16 = sbr.rel (%p14) target = $region8
    $region5: #{batchnorm_conv1d.3} parent=1 // loop_body
      %s18 = ssub.s32 %s13, 1
      %s19 = ssub.s32 %s13, 2
      %s20 = sadd.s32 %s13, 1
      %s21 = ssub.s32 %s13, %s20
      %p22 = scmp.eq.s32.totalorder %s21, 0
      %s24 = sadd.s32 %s23, 1
      %s25 = scalar_select %p22, %s23, %s24
      %p28 = pneg %p22
      %p29 = scmp.eq.s32.totalorder %s13, 1
      %p30 = por %p28, %p29
      %p31 = scmp.ne.s32.totalorder %s23, %s26
      %p32 = scmp.eq.s32.totalorder %s13, 0
      %p33 = por %p31, %p32
      %p34 = scmp.ne.s32.totalorder %s23, %s26
      %p35 = scmp.eq.s32.totalorder %s18, 1
      %p36 = por %p34, %p35
      %p37 = scmp.ne.s32.totalorder %s26, %s27
      %p38 = scmp.eq.s32.totalorder %s18, 0
      %p39 = por %p37, %p38
      %p40 = scmp.ne.s32.totalorder %s26, %s27
      %p41 = scmp.eq.s32.totalorder %s19, 1
      %p42 = por %p40, %p41
      %p44 = scmp.ne.s32.totalorder %s27, %s43
      %p45 = scmp.eq.s32.totalorder %s19, 0
      %p46 = por %p44, %p45
      %s48 = sadd.s32 %s47, 1
      %p51 = scmp.eq.s32.totalorder %s13, 1
      %p52 = scmp.ne.s32.totalorder %s47, %s49
      %p53 = scmp.eq.s32.totalorder %s13, 0
      %p54 = por %p52, %p53
      %p55 = scmp.ne.s32.totalorder %s47, %s49
      %p56 = scmp.eq.s32.totalorder %s18, 1
      %p57 = por %p55, %p56
      %p58 = scmp.ne.s32.totalorder %s49, %s50
      %p59 = scmp.eq.s32.totalorder %s18, 0
      %p60 = por %p58, %p59
      %p61 = scmp.ne.s32.totalorder %s49, %s50
      %p62 = scmp.eq.s32.totalorder %s19, 1
      %p63 = por %p61, %p62
      %p65 = scmp.ne.s32.totalorder %s50, %s64
      %p66 = scmp.eq.s32.totalorder %s19, 0
      %p67 = por %p65, %p66
      %s69 = sadd.s32 %s68, 1
      %p72 = scmp.eq.s32.totalorder %s13, 1
      %p73 = scmp.ne.s32.totalorder %s68, %s70
      %p74 = scmp.eq.s32.totalorder %s13, 0
      %p75 = por %p73, %p74
      %p76 = scmp.ne.s32.totalorder %s68, %s70
      %p77 = scmp.eq.s32.totalorder %s18, 1
      %p78 = por %p76, %p77
      %p79 = scmp.ne.s32.totalorder %s70, %s71
      %p80 = scmp.eq.s32.totalorder %s18, 0
      %p81 = por %p79, %p80
      %p82 = scmp.ne.s32.totalorder %s70, %s71
      %p83 = scmp.eq.s32.totalorder %s19, 1
      %p84 = por %p82, %p83
      %p86 = scmp.ne.s32.totalorder %s71, %s85
      %p87 = scmp.eq.s32.totalorder %s19, 0
      %p88 = por %p86, %p87
      %s90 = sadd.s32 %s89, 1
      %p93 = scmp.eq.s32.totalorder %s13, 1
      %p94 = scmp.ne.s32.totalorder %s89, %s91
      %p95 = scmp.eq.s32.totalorder %s13, 0
      %p96 = por %p94, %p95
      %p97 = scmp.ne.s32.totalorder %s89, %s91
      %p98 = scmp.eq.s32.totalorder %s18, 1
      %p99 = por %p97, %p98
      %p100 = scmp.ne.s32.totalorder %s91, %s92
      %p101 = scmp.eq.s32.totalorder %s18, 0
      %p102 = por %p100, %p101
      %p103 = scmp.ne.s32.totalorder %s91, %s92
      %p104 = scmp.eq.s32.totalorder %s19, 1
      %p105 = por %p103, %p104
      %p107 = scmp.ne.s32.totalorder %s92, %s106
      %p108 = scmp.eq.s32.totalorder %s19, 0
      %p109 = por %p107, %p108
      %s110 = ssub.s32 %s13, %s20
      %p111 = scmp.eq.s32.totalorder %s110, 0
      %s113 = sadd.s32 %s112, 1
      %s114 = scalar_select %p111, %s112, %s113
      %p117 = pneg %p111
      %p118 = scmp.eq.s32.totalorder %s13, 1
      %p119 = por %p117, %p118
      %p120 = scmp.ne.s32.totalorder %s112, %s115
      %p121 = scmp.eq.s32.totalorder %s13, 0
      %p122 = por %p120, %p121
      %p123 = scmp.ne.s32.totalorder %s112, %s115
      %p124 = scmp.eq.s32.totalorder %s18, 1
      %p125 = por %p123, %p124
      %p126 = scmp.ne.s32.totalorder %s115, %s116
      %p127 = scmp.eq.s32.totalorder %s18, 0
      %p128 = por %p126, %p127
      %p129 = scmp.ne.s32.totalorder %s115, %s116
      %p130 = scmp.eq.s32.totalorder %s19, 1
      %p131 = por %p129, %p130
      %p133 = scmp.ne.s32.totalorder %s116, %s132
      %p134 = scmp.eq.s32.totalorder %s19, 0
      %p135 = por %p133, %p134
      %p136 = scmp.le.s32.totalorder 1, %s13
      %p137 = scmp.lt.s32.totalorder %s13, 3
      %p138 = pnand %p136, %p137
      %p139 = pneg %p138
      // Predicated region
      $region9: #{batchnorm_conv1d.3} parent=5 // pred_check
        _
      $region10: #{batchnorm_conv1d.3} parent=5 // pred_check_branch
        %141 = sbr.rel (%p138) target = $region12
      $region11: #{batchnorm_conv1d.3} parent=5 // pred_region
        %s142 = ssub.s32 %s13, 1
        // Predicated region
        $region13: #{batchnorm_conv1d.3} parent=11 // pred_check
          %p143 = pneg %p60
        $region14: #{batchnorm_conv1d.3} parent=11 // pred_check_branch
          %145 = sbr.rel (%p143) target = $region16
        $region15: #{batchnorm_conv1d.3} parent=11 // pred_region
          _
        $region16: #{batchnorm_conv1d.3} parent=11 // pred_fallthru
          _
        // Predicated region
        $region17: #{batchnorm_conv1d.3} parent=11 // pred_check
          %p146 = pneg %p81
        $region18: #{batchnorm_conv1d.3} parent=11 // pred_check_branch
          %148 = sbr.rel (%p146) target = $region20
        $region19: #{batchnorm_conv1d.3} parent=11 // pred_region
          _
        $region20: #{batchnorm_conv1d.3} parent=11 // pred_fallthru
          _
        // Predicated region
        $region21: #{batchnorm_conv1d.3} parent=11 // pred_check
          %p149 = pneg %p102
        $region22: #{batchnorm_conv1d.3} parent=11 // pred_check_branch
          %151 = sbr.rel (%p149) target = $region24
        $region23: #{batchnorm_conv1d.3} parent=11 // pred_region
          _
        $region24: #{batchnorm_conv1d.3} parent=11 // pred_fallthru
          _
      $region12: #{batchnorm_conv1d.3} parent=5 // pred_fallthru
        _
      %p152 = scmp.lt.s32.totalorder %s13, 2
      // Predicated region
      $region25: #{batchnorm_conv1d.3} parent=5 // pred_check
        %p153 = pneg %p152
      $region26: #{batchnorm_conv1d.3} parent=5 // pred_check_branch
        %155 = sbr.rel (%p153) target = $region28
      $region27: #{batchnorm_conv1d.3} parent=5 // pred_region
        // Predicated region
        $region29: #{batchnorm_conv1d.3} parent=27 // pred_check
          %p156 = pneg %p33
        $region30: #{batchnorm_conv1d.3} parent=27 // pred_check_branch
          %158 = sbr.rel (%p156) target = $region32
        $region31: #{batchnorm_conv1d.3} parent=27 // pred_region
          %p159 = scmp.lt.s32.totalorder %s13, 1
          %s160 = scalar_select %p159, %s13, 1
          %s161 = smul.addr %s160, 4
          %s162 = scalar_lea.vmem %s0, %s161
        $region32: #{batchnorm_conv1d.3} parent=27 // pred_fallthru
          _
      $region28: #{batchnorm_conv1d.3} parent=5 // pred_fallthru
        _
      %p163 = scmp.le.s32.totalorder 1, %s13
      %p164 = scmp.lt.s32.totalorder %s13, 3
      %p165 = pnand %p163, %p164
      %p166 = pneg %p165
      // Predicated region
      $region33: #{batchnorm_conv1d.3} parent=5 // pred_check
        _
      $region34: #{batchnorm_conv1d.3} parent=5 // pred_check_branch
        %168 = sbr.rel (%p165) target = $region36
      $region35: #{batchnorm_conv1d.3} parent=5 // pred_region
        %s169 = ssub.s32 %s13, 1
        %p170 = scmp.lt.s32.totalorder %s18, 1
        %s171 = scalar_select %p170, %s18, 1
        %s172 = smul.addr %s171, 4
        %s173 = scalar_lea.vmem %s0, %s172
        %p174 = pneg %p39
        %p175 = pneg %p36
        %p176 = pneg %p60
        %p177 = pneg %p57
        %p178 = pneg %p81
        %p179 = pneg %p78
        %p180 = pneg %p102
        %p181 = pneg %p99
        %p182 = pneg %p128
        %p183 = pneg %p125
        %s184 = sand.u32 %s115, 1
        %s185 = scalar_lea.sflag [#allocation4], %s184
        %s186 = sand.u32 %s115, 1
        %s187 = smul.addr %s186, 8
        %s188 = scalar_lea.vmem [#allocation3], %s187
        %p189 = scmp.lt.s32.totalorder %s18, 1
        %s190 = scalar_select %p189, %s18, 1
        %s191 = smul.addr %s190, 4
        %s192 = scalar_lea.vmem %s0, %s191
        %v193 = vld [vmem:[%s192] sm:$0xf]
        %vm194 = vcmask 3072
        %195 = vst.msk [vmem:[#allocation2] sm:$0xf] %vm194, 0.0
        %vm196 = vcmask 142472
        %197 = vst.msk [vmem:[#allocation2] sm:$0xf] %vm196, 0.0
        %199 = vrot.lane.b32.xlu0 %v193, 1
        %v200 = vpop.permute.xlu0 %199
        %vm202 = vcmask 134152
        %203 = vst.msk [vmem:[#allocation2] sm:$0xf] %vm202, %v200
        %v204 = vld [vmem:[#allocation2] sm:$0xf]
        %v205 = vld [vmem:[%s1] sm:$0xff]
        %v207 = vrot.slane %v204, 4
        %208 = vrot.lane.b32.xlu0 %v207, 127
        %v209 = vpop.permute.xlu0 %208
        %211 = vrot.lane.b32.xlu0 %v204, 126
        %v212 = vpop.permute.xlu0 %211
        %vm213 = vcmask 1043456
        %v214 = vsel %vm213, %v204, %v209
        %vm215 = vcmask 97280
        %v217 = vsel %vm215, %v205, 0
        %v219 = vsel %vm213, %v212, 0
        %221 = vmatprep.subr.mxu0 0.0
        %222 = vmatpush1.msra.mxu0 0.0
        %223 = vmatprep.subr.mxu0 0.0
        %224 = vmatpush1.msra.mxu0 0.0
        %225 = vmatprep.subr.mxu0 0.0
        %226 = vmatpush1.msra.mxu0 0.0
        %227 = vmatprep.subr.mxu0 0.0
        %228 = vmatpush1.msra.mxu0 0.0
        %229 = vmatprep.subr.mxu0 0.0
        %230 = vmatpush1.msra.mxu0 0.0
        %231 = vmatprep.subr.mxu0 0.0
        %232 = vmatpush1.msra.mxu0 0.0
        %233 = vmatprep.subr.mxu0 0.0
        %234 = vmatpush1.msra.mxu0 0.0
        %235 = vmatprep.subr.mxu0 0.0
        %236 = vmatpush1.msra.mxu0 0.0
        %237 = vmatprep.subr.mxu0 0.0
        %238 = vmatpush1.msra.mxu0 0.0
        %239 = vmatprep.subr.mxu0 0.0
        %240 = vmatpush1.msra.mxu0 0.0
        %241 = vmatprep.subr.mxu0 0.0
        %242 = vmatpush1.msra.mxu0 0.0
        %243 = vmatprep.subr.mxu0 0.0
        %244 = vmatpush1.msra.mxu0 0.0
        %245 = vmatprep.subr.mxu0 0.0
        %246 = vmatpush1.msra.mxu0 0.0
        %247 = vmatprep.subr.mxu0 0.0
        %248 = vmatpush1.msra.mxu0 0.0
        %249 = vmatprep.subr.mxu0 0.0
        %250 = vmatpush1.msra.mxu0 %v219
        %251 = vmatprep.subr.mxu0 0.0
        %252 = vmatpush1.msra.mxu0 %v214
        %253 = vmatprep.subr.mxu0 0.0
        %254 = vmatpush2.msra.mxu0 0.0
        %255 = vmatprep.subr.mxu0 0.0
        %256 = vmatpush2.msra.mxu0 0.0
        %257 = vmatprep.subr.mxu0 0.0
        %258 = vmatpush2.msra.mxu0 0.0
        %259 = vmatprep.subr.mxu0 0.0
        %260 = vmatpush2.msra.mxu0 0.0
        %261 = vmatprep.subr.mxu0 0.0
        %262 = vmatpush2.msra.mxu0 0.0
        %263 = vmatprep.subr.mxu0 0.0
        %264 = vmatpush2.msra.mxu0 0.0
        %265 = vmatprep.subr.mxu0 0.0
        %266 = vmatpush2.msra.mxu0 0.0
        %267 = vmatprep.subr.mxu0 0.0
        %268 = vmatpush2.msra.mxu0 0.0
        %269 = vmatprep.subr.mxu0 0.0
        %270 = vmatpush2.msra.mxu0 0.0
        %271 = vmatprep.subr.mxu0 0.0
        %272 = vmatpush2.msra.mxu0 0.0
        %273 = vmatprep.subr.mxu0 0.0
        %274 = vmatpush2.msra.mxu0 0.0
        %275 = vmatprep.subr.mxu0 0.0
        %276 = vmatpush2.msra.mxu0 0.0
        %277 = vmatprep.subr.mxu0 0.0
        %278 = vmatpush2.msra.mxu0 0.0
        %279 = vmatprep.subr.mxu0 0.0
        %280 = vmatpush2.msra.mxu0 0.0
        %281 = vmatprep.subr.mxu0 0.0
        %282 = vmatpush2.msra.mxu0 0.0
        %283 = vmatprep.subr.mxu0 0.0
        %284 = vmatpush2.msra.mxu0 0.0
        %285 = vmatprep.mubr.f32.mxu0 0.0
        %286 = vmatmul.mubr.f32.gmra.mxu0 %v217
        %v287 = vpop.f32.mrf.mxu0
        %v288 = vadd.f32 0.0, %v287
        %v289 = vpop.f32.mrf.mxu0
        %290 = vdwg.mxu0
        %v291 = vmax.f32 %v288, 0.0
        %v292 = vld [vmem:[%s2] sm:$0xff]
        %v293 = vld [vmem:[%s3] sm:$0xff]
        %295 = vset.pattern.permute.xlu0 0
        %296 = vperm.xlu0 %295, %v292
        %v297 = vpop.permute.xlu0 %296
        %v299 = vmul.f32 %v291, %v297
        %301 = vset.pattern.permute.xlu0 0
        %302 = vperm.xlu0 %301, %v293
        %v303 = vpop.permute.xlu0 %302
        %v305 = vadd.f32 %v299, %v303
        %vm306 = vcmask 130048
        %307 = vst.msk [vmem:[%s188] sm:$0xff] %vm306, %v305
        %s308 = sand.u32 %s115, 1
        %s309 = scalar_lea.sflag [#allocation4], %s308
        %s310 = sand.u32 %s115, 1
        %s311 = smul.addr %s310, 8
        %s312 = scalar_lea.vmem [#allocation3], %s311
        // Predicated region
        $region37: #{batchnorm_conv1d.3} parent=35 // pred_check
          %p313 = pneg %p125
        $region38: #{batchnorm_conv1d.3} parent=35 // pred_check_branch
          %315 = sbr.rel (%p313) target = $region40
        $region39: #{batchnorm_conv1d.3} parent=35 // pred_region
          %s317 = ssub.s32 128, 128
          %318 = vsyncadd %s309, %s317
          %s319 = smul.addr %s18, 128
          %s320 = scalar_lea.hbm %s4, %s319
          %s322 = sshll.u32 %s312, 4
          %s323 = int_to_ptr.vmem [resolvable:$true] %s322
          %325 = dma.vmem_to_hbm [thread:$0]  %s323, 128, %s320, %s309
        $region40: #{batchnorm_conv1d.3} parent=35 // pred_fallthru
          _
      $region36: #{batchnorm_conv1d.3} parent=5 // pred_fallthru
        _
      %p326 = scmp.le.s32.totalorder 2, %s13
      // Predicated region
      $region41: #{batchnorm_conv1d.3} parent=5 // pred_check
        %p327 = pneg %p326
      $region42: #{batchnorm_conv1d.3} parent=5 // pred_check_branch
        %329 = sbr.rel (%p327) target = $region44
      $region43: #{batchnorm_conv1d.3} parent=5 // pred_region
        %s330 = ssub.s32 %s13, 2
        // Predicated region
        $region45: #{batchnorm_conv1d.3} parent=43 // pred_check
          %p331 = pneg %p131
        $region46: #{batchnorm_conv1d.3} parent=43 // pred_check_branch
          %333 = sbr.rel (%p331) target = $region48
        $region47: #{batchnorm_conv1d.3} parent=43 // pred_region
          %s334 = sand.u32 %s116, 1
          %s335 = scalar_lea.sflag [#allocation4], %s334
          %s336 = sand.u32 %s116, 1
          %s337 = smul.addr %s336, 8
          %s338 = scalar_lea.vmem [#allocation3], %s337
          %339 = dma.done %s335, 128
        $region48: #{batchnorm_conv1d.3} parent=43 // pred_fallthru
          _
      $region44: #{batchnorm_conv1d.3} parent=5 // pred_fallthru
        _
    $region6: #{batchnorm_conv1d.3} parent=1 // loop_footer
      %s17 = sadd.s32 1, %s13
    $region7: #{batchnorm_conv1d.3} parent=1 // loop_footer_branch
      %12 = sbr.rel target = $region3
    $region8: #{batchnorm_conv1d.3} parent=1 // loop_exit
      _
    %340 = vsyncpa [#allocation4], 1
    %s341 = scalar_lea.sflag [#allocation4], 1
    %342 = vsyncpa %s341, 1

</llo_original>
